<compile_context>
chip_gen: v7x
topology: tpu7x:2x2x1
jax: 0.10.0
libtpu: 0.0.40
codegen_flags: <defaults>
</compile_context>

<pallas_src>
import math

import jax
import jax.numpy as jnp
from jax.experimental import pallas as pl
from jax.experimental.pallas import tpu as pltpu

_VMEM_TILE_BUDGET = 36 << 20       # max bytes for double-buffered tiles + scratch
_WEIGHT_RESIDENT_BYTES = 6 << 20   # keep whole weight in VMEM below this size
_SUBLANE_MIN = {4: 8, 2: 16, 1: 32}


def _round_up(x, m):
    return (x + m - 1) // m * m


def _cdiv(a, b):
    return (a + b - 1) // b


def _largest_divisor_tile(total, candidates):
    for c in candidates:
        if total % c == 0:
            return c
    return 128  # total is always a multiple of 128


def _matmul_bias_kernel(x_ref, w_ref, b_ref, o_ref, acc_ref):
    """Canonical tiled matmul: K-reduction innermost, f32 VMEM accumulator.

    The accumulator is initialized with the (broadcast) f32 bias at the first
    K step, so there is no separate bias add in the epilogue.
    """
    k = pl.program_id(2)

    @pl.when(k == 0)
    def _():
        acc_ref[...] = jnp.broadcast_to(b_ref[...], acc_ref.shape)

    acc_ref[...] += jnp.dot(x_ref[...], w_ref[...],
                            preferred_element_type=jnp.float32)

    @pl.when(k == pl.num_programs(2) - 1)
    def _():
        o_ref[...] = acc_ref[...].astype(o_ref.dtype)


def _select_tiles(M, K_pad, N_pad, itemsize, sublane, out_itemsize):
    """Pick (tm, tk, tn, M_pad, footprint_bytes) for the grid."""
    # Weight-resident fast path: constant block index => DMA'd from HBM once.
    resident = (K_pad * N_pad * itemsize <= _WEIGHT_RESIDENT_BYTES
                and K_pad <= 2048 and N_pad <= 2048)
    if resident:
        tk, tn = K_pad, N_pad
    else:
        tk = K_pad if K_pad <= 4096 else _largest_divisor_tile(
            K_pad, (2048, 1024, 512, 256, 128))
        tn = N_pad if N_pad <= 1024 else _largest_divisor_tile(
            N_pad, (512, 256, 128))

    # M tiling: largest tile <= ~512 rows with minimal ragged waste.
    m_tiles = _cdiv(M, 512)
    # v7x megacore: make sure the parallel (i, j) grid has >= 2 points for
    # problems big enough to care (dimension_semantics alone does nothing
    # when the axis extent is 1).
    if m_tiles * (N_pad // tn) < 2 and M >= 256:
        m_tiles = 2
    tm = _round_up(_cdiv(M, m_tiles), sublane)

    def footprint(tm_):
        return (2 * (tm_ * tk + tk * tn) * itemsize   # x, w (double-buffered)
                + 2 * tm_ * tn * out_itemsize          # out (double-buffered)
                + tm_ * tn * 4                         # f32 accumulator scratch
                + 2 * tn * 4)                          # bias

    # VMEM safety (64 MiB physical on v7x): shrink the M tile until it fits.
    while footprint(tm) > _VMEM_TILE_BUDGET and tm > sublane:
        m_tiles *= 2
        tm = _round_up(_cdiv(M, m_tiles), sublane)

    M_pad = _round_up(M, tm)
    return tm, tk, tn, M_pad, footprint(tm)


def prepare_matmul_params(matrix, bias=None, compute_dtype=None):
    """One-time parameter prep (module __init__ equivalent).

    matrix: (in_channels, out_channels); bias: (1, 1, out_channels) or None.
    * K and N padded to multiples of 128 only (no 512 over-padding).
    * Weight stored in `compute_dtype` (e.g. jnp.bfloat16 for the fast MXU
      path); bias always kept in float32 (added inside the f32 accumulator).
    """
    matrix = jnp.asarray(matrix)
    K, N = matrix.shape
    compute_dtype = jnp.dtype(compute_dtype if compute_dtype is not None
                              else matrix.dtype)
    K_pad = _round_up(K, 128)
    N_pad = _round_up(N, 128)
    w_pad = jnp.pad(matrix.astype(compute_dtype),
                    ((0, K_pad - K), (0, N_pad - N)))
    if bias is None:
        b_pad = jnp.zeros((1, N_pad), jnp.float32)        # use_bias=False path
    else:
        b_pad = jnp.pad(jnp.asarray(bias, jnp.float32).reshape(1, N),
                        ((0, 0), (0, N_pad - N)))
    return {"w_pad": w_pad, "b_pad": b_pad,
            "in_channels": K, "out_channels": N,
            "compute_dtype": compute_dtype}


def matmul_forward(x, params):
    """y = x @ matrix (+ bias) on the last dim of an arbitrary-rank x."""
    w_pad, b_pad = params["w_pad"], params["b_pad"]
    K, N = params["in_channels"], params["out_channels"]
    cdt = params["compute_dtype"]
    K_pad, N_pad = w_pad.shape
    assert x.shape[-1] == K, "last dim of x must equal in_channels"

    out_dtype = x.dtype
    lead = x.shape[:-1]
    M = math.prod(lead) if lead else 1
    x2d = x.reshape(M, K).astype(cdt)

    itemsize = jnp.dtype(cdt).itemsize
    sublane = _SUBLANE_MIN.get(itemsize, 8)
    tm, tk, tn, M_pad, fp = _select_tiles(
        M, K_pad, N_pad, itemsize, sublane, jnp.dtype(out_dtype).itemsize)

    # Pad the activation only when actually required (trace-time check). The
    # explicit zero-pad along K is load-bearing: ragged-K garbage would give
    # 0 * NaN = NaN in the accumulator.
    if M_pad != M or K_pad != K:
        x2d = jnp.pad(x2d, ((0, M_pad - M), (0, K_pad - K)))

    grid = (M_pad // tm, N_pad // tn, K_pad // tk)
    vmem_limit = int(min(48 << 20, max(32 << 20, fp + (8 << 20))))

    out = pl.pallas_call(
        _matmul_bias_kernel,
        out_shape=jax.ShapeDtypeStruct((M_pad, N_pad), out_dtype),
        grid_spec=pltpu.PrefetchScalarGridSpec(
            num_scalar_prefetch=0,
            grid=grid,
            in_specs=[
                pl.BlockSpec((tm, tk), lambda i, j, k: (i, k)),
                pl.BlockSpec((tk, tn), lambda i, j, k: (k, j)),
                pl.BlockSpec((1, tn), lambda i, j, k: (0, j)),
            ],
            out_specs=pl.BlockSpec((tm, tn), lambda i, j, k: (i, j)),
            scratch_shapes=[pltpu.VMEM((tm, tn), jnp.float32)],
        ),
        compiler_params=pltpu.CompilerParams(
            dimension_semantics=("parallel", "parallel", "arbitrary"),
            vmem_limit_bytes=vmem_limit),
    )(x2d, w_pad, b_pad)

    if M_pad != M or N_pad != N:
        out = out[:M, :N]
    return out.reshape(lead + (N,))


if __name__ == "__main__":
    key = jax.random.PRNGKey(0)
    k1, k2, k3, k4 = jax.random.split(key, 4)

    batch, seq, in_ch, hid, out_ch = 2, 8, 100, 128, 2
    x = jax.random.normal(k1, (batch, seq, in_ch), jnp.float32)

    # Layer 1: MatMul(in_ch, hid), xavier-normal weight, bias exercised.
    std1 = (2.0 / (in_ch + hid)) ** 0.5
    w1 = std1 * jax.random.normal(k2, (in_ch, hid), jnp.float32)
    b1 = 0.1 * jax.random.normal(k3, (1, 1, hid), jnp.float32)
    p1 = prepare_matmul_params(w1, b1)

    # Layer 2: MatMul(hid, out_ch=2), use_bias=False -> exercises the tiny-N
    # (lane-padded) output path and the no-activation-pad fast path.
    std2 = (2.0 / (hid + out_ch)) ** 0.5
    w2 = std2 * jax.random.normal(k4, (hid, out_ch), jnp.float32)
    p2 = prepare_matmul_params(w2, None)

    # NOTE: for this exact 2-layer (hid=128 -> out_ch=2) pattern the two
    # matmuls could be fused into one kernel epilogue to skip the HBM
    # round-trip of the intermediate; kept as two calls to preserve the
    # standalone MatMul-module semantics.
    y1 = matmul_forward(x, p1)
    y2 = matmul_forward(y1, p2)
    y1, y2 = jax.block_until_ready((y1, y2))

    # Pure-JAX reference mirroring the PyTorch forward exactly.
    ref1 = jnp.matmul(x, w1, precision=jax.lax.Precision.HIGHEST) + b1
    ref2 = jnp.matmul(ref1, w2, precision=jax.lax.Precision.HIGHEST)

    assert jnp.allclose(y1, ref1, atol=1e-4, rtol=1e-4), "layer-1 mismatch"
    assert jnp.allclose(y2, ref2, atol=1e-4, rtol=1e-4), "layer-2 mismatch"

    # bf16 fast path (weight stored in bf16, f32 accumulation) — looser tol.
    p1_bf16 = prepare_matmul_params(w1, b1, compute_dtype=jnp.bfloat16)
    y1_bf16 = jax.block_until_ready(matmul_forward(x, p1_bf16))
    assert jnp.allclose(y1_bf16, ref1, atol=7e-2, rtol=7e-2), "bf16 mismatch"

    print("KERNEL_OK")
</pallas_src>

<mosaic_0001>
module attributes {stable_mosaic.version = 11 : i64} {
  func.func @_matmul_bias_kernel(%arg0: i32, %arg1: i32, %arg2: i32, %arg3: memref<16x128xf32, #tpu.memory_space<vmem>>, %arg4: memref<128x128xf32, #tpu.memory_space<vmem>>, %arg5: memref<1x128xf32, #tpu.memory_space<vmem>>, %arg6: memref<16x128xf32, #tpu.memory_space<vmem>>, %arg7: memref<16x128xf32, #tpu.memory_space<vmem>>) attributes {dimension_semantics = [#tpu.dimension_semantics<parallel>, #tpu.dimension_semantics<parallel>, #tpu.dimension_semantics<arbitrary>], iteration_bounds = array<i64: 1, 1, 1>, scalar_prefetch = 0 : i64, scratch_operands = 1 : i64, tpu.core_type = #tpu.core_type<tc>, window_params = [{transform_indices = @transform_0, window_bounds = array<i64: 16, 128>}, {transform_indices = @transform_1, window_bounds = array<i64: 128, 128>}, {transform_indices = @transform_2, window_bounds = array<i64: 1, 128>}, {transform_indices = @transform_3, window_bounds = array<i64: 16, 128>}]} {
    %c0_i32 = arith.constant 0 : i32
    %0 = arith.cmpi eq, %arg2, %c0_i32 : i32
    %1 = arith.extui %0 : i1 to i32
    %c0_i32_0 = arith.constant 0 : i32
    %2 = arith.cmpi ne, %1, %c0_i32_0 : i32
    scf.if %2 {
      %c0_10 = arith.constant 0 : index
      %c0_11 = arith.constant 0 : index
      %12 = vector.load %arg5[%c0_10, %c0_11] : memref<1x128xf32, #tpu.memory_space<vmem>>, vector<1x128xf32>
      %13 = vector.shape_cast %12 : vector<1x128xf32> to vector<1x128xf32>
      %14 = vector.broadcast %13 : vector<1x128xf32> to vector<16x128xf32>
      %c0_12 = arith.constant 0 : index
      %c0_13 = arith.constant 0 : index
      %15 = vector.load %arg7[%c0_12, %c0_13] : memref<16x128xf32, #tpu.memory_space<vmem>>, vector<16x128xf32>
      tpu.vector_store %arg7[%c0_12, %c0_13], %14 {strides = array<i32>} : memref<16x128xf32, #tpu.memory_space<vmem>>, vector<16x128xf32>,
    } else {
    }
    %c0 = arith.constant 0 : index
    %c0_1 = arith.constant 0 : index
    %3 = vector.load %arg7[%c0, %c0_1] : memref<16x128xf32, #tpu.memory_space<vmem>>, vector<16x128xf32>
    %c0_2 = arith.constant 0 : index
    %c0_3 = arith.constant 0 : index
    %4 = vector.load %arg3[%c0_2, %c0_3] : memref<16x128xf32, #tpu.memory_space<vmem>>, vector<16x128xf32>
    %c0_4 = arith.constant 0 : index
    %c0_5 = arith.constant 0 : index
    %5 = vector.load %arg4[%c0_4, %c0_5] : memref<128x128xf32, #tpu.memory_space<vmem>>, vector<128x128xf32>
    %cst = arith.constant dense<0.000000e+00> : vector<16x128xf32>
    %6 = tpu.matmul %4, %5, %cst {dimension_numbers = #tpu.dot_dimension_numbers<[1], [0], [0], [1], [0, 0, 1, 1], [], []>} : vector<16x128xf32>, vector<128x128xf32>, vector<16x128xf32> -> vector<16x128xf32>
    %7 = arith.addf %3, %6 : vector<16x128xf32>
    %c0_6 = arith.constant 0 : index
    %c0_7 = arith.constant 0 : index
    %8 = vector.load %arg7[%c0_6, %c0_7] : memref<16x128xf32, #tpu.memory_space<vmem>>, vector<16x128xf32>
    tpu.vector_store %arg7[%c0_6, %c0_7], %7 {strides = array<i32>} : memref<16x128xf32, #tpu.memory_space<vmem>>, vector<16x128xf32>,
    %c0_i32_8 = arith.constant 0 : i32
    %9 = arith.cmpi eq, %arg2, %c0_i32_8 : i32
    %10 = arith.extui %9 : i1 to i32
    %c0_i32_9 = arith.constant 0 : i32
    %11 = arith.cmpi ne, %10, %c0_i32_9 : i32
    scf.if %11 {
      %c0_10 = arith.constant 0 : index
      %c0_11 = arith.constant 0 : index
      %12 = vector.load %arg7[%c0_10, %c0_11] : memref<16x128xf32, #tpu.memory_space<vmem>>, vector<16x128xf32>
      %c0_12 = arith.constant 0 : index
      %c0_13 = arith.constant 0 : index
      %13 = vector.load %arg6[%c0_12, %c0_13] : memref<16x128xf32, #tpu.memory_space<vmem>>, vector<16x128xf32>
      tpu.vector_store %arg6[%c0_12, %c0_13], %12 {strides = array<i32>} : memref<16x128xf32, #tpu.memory_space<vmem>>, vector<16x128xf32>,
    } else {
    }
    return
  }
  func.func @transform_0(%arg0: i32, %arg1: i32, %arg2: i32) -> (i32, i32) {
    %c0_i32 = arith.constant 0 : i32
    return %arg0, %arg2 : i32, i32
  }
  func.func @transform_1(%arg0: i32, %arg1: i32, %arg2: i32) -> (i32, i32) {
    %c0_i32 = arith.constant 0 : i32
    return %arg2, %arg1 : i32, i32
  }
  func.func @transform_2(%arg0: i32, %arg1: i32, %arg2: i32) -> (i32, i32) {
    %c0_i32 = arith.constant 0 : i32
    %c0_i32_0 = arith.constant 0 : i32
    return %c0_i32, %arg1 : i32, i32
  }
  func.func @transform_3(%arg0: i32, %arg1: i32, %arg2: i32) -> (i32, i32) {
    %c0_i32 = arith.constant 0 : i32
    return %arg0, %arg1 : i32, i32
  }
}

</mosaic_0001>

<llo_original>
// kernel: tpu_custom_call.1
$region0: #{tpu_custom_call.1}
  #allocation0 [shape = 'u32[]', space=smem, size = 0x4, offset = 0x4, fixed_abs, tag = 'smem constant byte address 0x4 - core index']
  #allocation1 [shape = 'u32[144,128]{1,0:T(1,128)}', space=vmem, size = 0x12000, scoped, tag = 'internal scratch']
  #allocation2 [shape = 'f32[16,128]{1,0:T(8,128)}', space=vmem, size = 0x2000, scoped, tag = 'scratch operand']
  %s0 = inlined_call_operand.hbm [shape: f32[16,128], index: 0, kind: input, shape index: {}]
  %s1 = inlined_call_operand.hbm [shape: f32[128,128], index: 1, kind: input, shape index: {}]
  %s2 = inlined_call_operand.vmem [shape: f32[1,128], index: 2, kind: input, shape index: {}]
  %s3 = inlined_call_operand.hbm [shape: f32[16,128], index: 3, kind: output, shape index: {}]
  %s4 = sld [smem:[#allocation0]]
  $region38: #{tpu_custom_call.1} parent=0
    _
  %s6 = ssub.s32 1, %s4
  %s7 = scalar_select 0, %s6, %s4
  $region1: #{tpu_custom_call.1} parent=0
    #allocation3 [shape = 'u8[8192]{0}', space=vmem, size = 0x2000, scoped, tag = 'input window, operand 0, single buffered']
    #allocation4 [shape = 's32[1]{0}', space=sflag, size = 0x4, scoped, tag = 'scoped memory for tpu_custom_call.1']
    #allocation5 [shape = 's32[1]{0}', space=sflag, size = 0x4, scoped, tag = 'scoped memory for tpu_custom_call.1']
    #allocation6 [shape = 'u8[65536]{0}', space=vmem, size = 0x10000, scoped, tag = 'input window, operand 1, single buffered']
    #allocation7 [shape = 's32[1]{0}', space=sflag, size = 0x4, scoped, tag = 'scoped memory for tpu_custom_call.1']
    #allocation8 [shape = 'u8[8192]{0}', space=vmem, size = 0x2000, scoped, tag = 'output window, operand 0, single buffered']
    %8 = vsyncpa [#allocation4], 0
    %9 = vsyncpa [#allocation7], 0
    %10 = vsyncpa [#allocation5], 0
    // Predicated region
    $region2: #{tpu_custom_call.1} parent=1 // pred_check
      _
    $region3: #{tpu_custom_call.1} parent=1 // pred_check_branch
      %12 = sbr.rel (0) target = $region5
    $region4: #{tpu_custom_call.1} parent=1 // pred_region
      %s14 = ssub.s32 256, 256
      %15 = vsyncadd [#allocation4], %s14
      %s16 = sshll.u32 [#allocation3], 4
      %s17 = int_to_ptr.vmem [resolvable:$true] %s16
      %22 = dma.hbm_to_vmem [thread:$0]  %s0, 256, %s17, [#allocation4], 128, 128, 8
    $region5: #{tpu_custom_call.1} parent=1 // pred_fallthru
      _
    // Predicated region
    $region6: #{tpu_custom_call.1} parent=1 // pred_check
      _
    $region7: #{tpu_custom_call.1} parent=1 // pred_check_branch
      %24 = sbr.rel (0) target = $region9
    $region8: #{tpu_custom_call.1} parent=1 // pred_region
      %s26 = ssub.s32 2048, 2048
      %27 = vsyncadd [#allocation7], %s26
      %s28 = sshll.u32 [#allocation6], 4
      %s29 = int_to_ptr.vmem [resolvable:$true] %s28
      %34 = dma.hbm_to_vmem [thread:$0]  %s1, 2048, %s29, [#allocation7], 128, 128, 8
    $region9: #{tpu_custom_call.1} parent=1 // pred_fallthru
      _
    // Predicated region
    $region10: #{tpu_custom_call.1} parent=1 // pred_check
      _
    $region11: #{tpu_custom_call.1} parent=1 // pred_check_branch
      %36 = sbr.rel (0) target = $region13
    $region12: #{tpu_custom_call.1} parent=1 // pred_region
      _
    $region13: #{tpu_custom_call.1} parent=1 // pred_fallthru
      _
    // Predicated region
    $region14: #{tpu_custom_call.1} parent=1 // pred_check
      _
    $region15: #{tpu_custom_call.1} parent=1 // pred_check_branch
      %38 = sbr.rel (0) target = $region17
    $region16: #{tpu_custom_call.1} parent=1 // pred_region
      %39 = dma.done [#allocation4], 256
    $region17: #{tpu_custom_call.1} parent=1 // pred_fallthru
      _
    // Predicated region
    $region18: #{tpu_custom_call.1} parent=1 // pred_check
      _
    $region19: #{tpu_custom_call.1} parent=1 // pred_check_branch
      %41 = sbr.rel (0) target = $region21
    $region20: #{tpu_custom_call.1} parent=1 // pred_region
      %42 = dma.done [#allocation7], 2048
    $region21: #{tpu_custom_call.1} parent=1 // pred_fallthru
      _
    %p43 = scmp.eq.s32.totalorder 0, 0
    // Predicated region
    $region22: #{tpu_custom_call.1} parent=1 // pred_check
      %p44 = pneg %p43
    $region23: #{tpu_custom_call.1} parent=1 // pred_check_branch
      %46 = sbr.rel (%p44) target = $region25
    $region24: #{tpu_custom_call.1} parent=1 // pred_region
      %v47 = vld [vmem:[%s2] sm:$0x1]
      %v49 = vlaneseq
      %v50 = vshrl.u32 %v49, 7
      %v51 = vsub.s32 0, %v50
      %v52 = vrot.slane %v47, %v51
      %54 = vst [vmem:[#allocation2] sm:$0xff] %v52
      %55 = vst [vmem:[#allocation2 + $0x8] sm:$0xff] %v52
    $region25: #{tpu_custom_call.1} parent=1 // pred_fallthru
      _
    %v56 = vld [vmem:[#allocation2] sm:$0xff]
    %v57 = vld [vmem:[#allocation2 + $0x8] sm:$0xff]
    %v58 = vld [vmem:[#allocation3] sm:$0xff]
    %v59 = vld [vmem:[#allocation3 + $0x8] sm:$0xff]
    %v60 = vld [vmem:[#allocation6] sm:$0xff]
    %v61 = vld [vmem:[#allocation6 + $0x8] sm:$0xff]
    %v62 = vld [vmem:[#allocation6 + $0x10] sm:$0xff]
    %v63 = vld [vmem:[#allocation6 + $0x18] sm:$0xff]
    %v64 = vld [vmem:[#allocation6 + $0x20] sm:$0xff]
    %v65 = vld [vmem:[#allocation6 + $0x28] sm:$0xff]
    %v66 = vld [vmem:[#allocation6 + $0x30] sm:$0xff]
    %v67 = vld [vmem:[#allocation6 + $0x38] sm:$0xff]
    %v68 = vld [vmem:[#allocation6 + $0x40] sm:$0xff]
    %v69 = vld [vmem:[#allocation6 + $0x48] sm:$0xff]
    %v70 = vld [vmem:[#allocation6 + $0x50] sm:$0xff]
    %v71 = vld [vmem:[#allocation6 + $0x58] sm:$0xff]
    %v72 = vld [vmem:[#allocation6 + $0x60] sm:$0xff]
    %v73 = vld [vmem:[#allocation6 + $0x68] sm:$0xff]
    %v74 = vld [vmem:[#allocation6 + $0x70] sm:$0xff]
    %v75 = vld [vmem:[#allocation6 + $0x78] sm:$0xff]
    %76 = vmatprep.subr.mxu0 0.0
    %77 = vmatpush1.msra.mxu0 %v60
    %78 = vmatprep.subr.mxu0 0.0
    %79 = vmatpush1.msra.mxu0 %v61
    %80 = vmatprep.subr.mxu0 0.0
    %81 = vmatpush1.msra.mxu0 %v62
    %82 = vmatprep.subr.mxu0 0.0
    %83 = vmatpush1.msra.mxu0 %v63
    %84 = vmatprep.subr.mxu0 0.0
    %85 = vmatpush1.msra.mxu0 %v64
    %86 = vmatprep.subr.mxu0 0.0
    %87 = vmatpush1.msra.mxu0 %v65
    %88 = vmatprep.subr.mxu0 0.0
    %89 = vmatpush1.msra.mxu0 %v66
    %90 = vmatprep.subr.mxu0 0.0
    %91 = vmatpush1.msra.mxu0 %v67
    %92 = vmatprep.subr.mxu0 0.0
    %93 = vmatpush1.msra.mxu0 %v68
    %94 = vmatprep.subr.mxu0 0.0
    %95 = vmatpush1.msra.mxu0 %v69
    %96 = vmatprep.subr.mxu0 0.0
    %97 = vmatpush1.msra.mxu0 %v70
    %98 = vmatprep.subr.mxu0 0.0
    %99 = vmatpush1.msra.mxu0 %v71
    %100 = vmatprep.subr.mxu0 0.0
    %101 = vmatpush1.msra.mxu0 %v72
    %102 = vmatprep.subr.mxu0 0.0
    %103 = vmatpush1.msra.mxu0 %v73
    %104 = vmatprep.subr.mxu0 0.0
    %105 = vmatpush1.msra.mxu0 %v74
    %106 = vmatprep.subr.mxu0 0.0
    %107 = vmatpush1.msra.mxu0 %v75
    %108 = vmatprep.subr.mxu0 0.0
    %109 = vmatpush1.msra.mxu0 0.0
    %110 = vmatprep.subr.mxu0 0.0
    %111 = vmatpush1.msra.mxu0 0.0
    %112 = vmatprep.subr.mxu0 0.0
    %113 = vmatpush1.msra.mxu0 0.0
    %114 = vmatprep.subr.mxu0 0.0
    %115 = vmatpush1.msra.mxu0 0.0
    %116 = vmatprep.subr.mxu0 0.0
    %117 = vmatpush1.msra.mxu0 0.0
    %118 = vmatprep.subr.mxu0 0.0
    %119 = vmatpush1.msra.mxu0 0.0
    %120 = vmatprep.subr.mxu0 0.0
    %121 = vmatpush1.msra.mxu0 0.0
    %122 = vmatprep.subr.mxu0 0.0
    %123 = vmatpush1.msra.mxu0 0.0
    %124 = vmatprep.subr.mxu0 0.0
    %125 = vmatpush1.msra.mxu0 0.0
    %126 = vmatprep.subr.mxu0 0.0
    %127 = vmatpush1.msra.mxu0 0.0
    %128 = vmatprep.subr.mxu0 0.0
    %129 = vmatpush1.msra.mxu0 0.0
    %130 = vmatprep.subr.mxu0 0.0
    %131 = vmatpush1.msra.mxu0 0.0
    %132 = vmatprep.subr.mxu0 0.0
    %133 = vmatpush1.msra.mxu0 0.0
    %134 = vmatprep.subr.mxu0 0.0
    %135 = vmatpush1.msra.mxu0 0.0
    %136 = vmatprep.subr.mxu0 0.0
    %137 = vmatpush1.msra.mxu0 0.0
    %138 = vmatprep.subr.mxu0 0.0
    %139 = vmatpush1.msra.mxu0 0.0
    %140 = vmatprep.mubr.f32.mxu0 0.0
    %141 = vmatmul.mubr.f32.gmra.mrb[0].mxu0 %v58
    %v142 = vpop.f32.mrb[0].mxu0
    %v143 = vadd.f32 0.0, %v142
    %v144 = vpop.f32.mrb[0].mxu0
    %145 = vmatprep.mubr.f32.mxu0 0.0
    %146 = vmatmul.mubr.f32.gmra.mrb[0].mxu0 %v59
    %v147 = vpop.f32.mrb[0].mxu0
    %v148 = vadd.f32 0.0, %v147
    %v149 = vpop.f32.mrb[0].mxu0
    %150 = vdwg.mxu0
    %v151 = vadd.f32 %v56, %v143
    %v152 = vadd.f32 %v57, %v148
    %153 = vst [vmem:[#allocation2] sm:$0xff] %v151
    %154 = vst [vmem:[#allocation2 + $0x8] sm:$0xff] %v152
    // Predicated region
    $region26: #{tpu_custom_call.1} parent=1 // pred_check
      %p155 = pneg %p43
    $region27: #{tpu_custom_call.1} parent=1 // pred_check_branch
      %157 = sbr.rel (%p155) target = $region29
    $region28: #{tpu_custom_call.1} parent=1 // pred_region
      %v158 = vld [vmem:[#allocation2] sm:$0xff]
      %v159 = vld [vmem:[#allocation2 + $0x8] sm:$0xff]
      %160 = vst [vmem:[#allocation8] sm:$0xff] %v158
      %161 = vst [vmem:[#allocation8 + $0x8] sm:$0xff] %v159
    $region29: #{tpu_custom_call.1} parent=1 // pred_fallthru
      _
    // Predicated region
    $region30: #{tpu_custom_call.1} parent=1 // pred_check
      _
    $region31: #{tpu_custom_call.1} parent=1 // pred_check_branch
      %163 = sbr.rel (0) target = $region33
    $region32: #{tpu_custom_call.1} parent=1 // pred_region
      %s165 = ssub.s32 256, 256
      %166 = vsyncadd [#allocation5], %s165
      %s167 = sshll.u32 [#allocation8], 4
      %s168 = int_to_ptr.vmem [resolvable:$true] %s167
      %173 = dma.vmem_to_hbm [thread:$0]  %s168, 256, %s3, [#allocation5], 128, 128, 8
    $region33: #{tpu_custom_call.1} parent=1 // pred_fallthru
      _
    // Predicated region
    $region34: #{tpu_custom_call.1} parent=1 // pred_check
      _
    $region35: #{tpu_custom_call.1} parent=1 // pred_check_branch
      %175 = sbr.rel (0) target = $region37
    $region36: #{tpu_custom_call.1} parent=1 // pred_region
      %176 = dma.done [#allocation5], 256
    $region37: #{tpu_custom_call.1} parent=1 // pred_fallthru
      _
    %177 = vsyncpa [#allocation4], 1
    %178 = vsyncpa [#allocation7], 1
    %179 = vsyncpa [#allocation5], 1

</llo_original>
